<compile_context>
chip_gen: v5e
topology: v5e:2x2
jax: 0.10.0
libtpu: 0.0.40
codegen_flags: <defaults>
</compile_context>

<pallas_src>
import functools

import jax
import jax.numpy as jnp
from jax import lax
from jax.experimental import pallas as pl
from jax.experimental.pallas import tpu as pltpu


def _contrastive_kernel(x0_ref, x1_ref, y_ref, out_ref, *,
                        margin, batch, block_rows, steps_per_split,
                        transposed, need_mask):
    c = pl.program_id(0)          # "parallel" split axis (one per TC on v7x)
    i = pl.program_id(1)          # sequential ("arbitrary") axis within a split

    # Zero this split's resident (1,1) accumulator at its first step.
    @pl.when(i == 0)
    def _():
        out_ref[...] = jnp.zeros_like(out_ref)

    # Compute in f32 regardless of the (possibly bf16) HBM dtype.
    x0 = x0_ref[...].astype(jnp.float32)      # (TB, D) or (D, TB)
    x1 = x1_ref[...].astype(jnp.float32)
    diff = x0 - x1
    red_axis = 0 if transposed else 1
    # TODO(synk): if a bundle profile shows VALU as the binding slot with bf16
    # inputs on v7x, offload this reduce to the idle MXU via
    # jnp.dot(diff*diff, ones((D, 1)), preferred_element_type=f32).
    dist_sq = jnp.sum(diff * diff, axis=red_axis, keepdims=True)
    dist = jnp.sqrt(dist_sq)
    mdist = jnp.maximum(margin - dist, 0.0)                  # clamp(min=0)
    y = y_ref[...]                                           # f32, same shape
    loss = y * dist_sq + (1.0 - y) * (mdist * mdist)

    if need_mask:
        # Rows past the true batch (padded last tile / clamped OOB tiles) are
        # NOT neutral for this loss and must be zeroed before the sum.  Padded
        # rows may hold unspecified data, but dist_sq >= 0 so sqrt never sees a
        # negative, and jnp.where discards anything from the dead branch.  Do
        # not replace this with arithmetic masking like `loss * mask` (would
        # reintroduce NaN propagation from garbage rows).
        row_axis = 1 if transposed else 0
        row = ((c * steps_per_split + i) * block_rows
               + lax.broadcasted_iota(jnp.int32, loss.shape, row_axis))
        loss = jnp.where(row < batch, loss, 0.0)

    out_ref[...] += jnp.sum(loss, axis=(0, 1), keepdims=True)


def _vmem_budget():
    """(f32-equivalent tile bytes, vmem_limit_bytes), generation-aware."""
    try:
        cap = int(pltpu.get_tpu_info().vmem_capacity_bytes)
    except Exception:
        cap = 64 * 1024 * 1024                 # conservative: assume v7x-class
    if cap <= 64 * 1024 * 1024:                # v7x: 64 MiB per TensorCore
        return 8 * 1024 * 1024, 56 * 1024 * 1024
    return 16 * 1024 * 1024, 96 * 1024 * 1024  # v5e / v6e: 128 MiB physical


def _choose_block_rows(batch, feat, align, max_rows, tile_bytes):
    """Largest aligned batch tile whose f32 working set is ~tile_bytes."""
    rows = max(1, tile_bytes // max(1, feat * 4))
    if max_rows is not None:
        rows = min(rows, max_rows)
    if rows >= batch:
        return batch                           # full dim: always a legal block
    rows = (rows // align) * align
    if rows < align:
        rows = align
    return batch if rows >= batch else rows


def make_contrastive_loss(margin: float = 1.0, max_block_rows=None,
                          num_splits: int = 2):
    """Returns a jitted contrastive-loss function backed by a Pallas kernel.

    num_splits=2 shards the batch stream across both v7x TensorCores via a
    leading "parallel" grid axis; on 1-TC chips the extra split is a harmless
    second sequential accumulator.
    """
    tile_bytes, vmem_limit = _vmem_budget()

    @jax.jit
    def contrastive_loss(x0, x1, y):
        batch, feat = x0.shape
        itemsize = jnp.dtype(x0.dtype).itemsize
        transposed = feat < 128        # lane-dense layout for small embeddings

        if transposed:
            align = 128                           # batch rides the lane axis
        else:
            align = 8 * max(1, 4 // itemsize)     # 8 f32 / 16 bf16 / 32 int8

        tb = _choose_block_rows(batch, feat, align, max_block_rows, tile_bytes)
        num_tiles = pl.cdiv(batch, tb)
        splits = max(1, min(num_splits, num_tiles))
        spc = pl.cdiv(num_tiles, splits)          # steps per split
        need_mask = (splits * spc * tb) != batch  # static: skip mask if exact

        if transposed:
            # (D, B): batch on the 128-wide lane axis -> full lane occupancy.
            # TODO(synk): the wrapper transpose is an extra HBM pass when
            # x0/x1 are not already produced transposed; fuse upstream if the
            # surrounding graph allows it.
            x0k, x1k = x0.T, x1.T
            yk = y.astype(jnp.float32).reshape(1, batch)
            x_spec = pl.BlockSpec((feat, tb), lambda c, i: (0, c * spc + i))
            y_spec = pl.BlockSpec((1, tb), lambda c, i: (0, c * spc + i))
        else:
            x0k, x1k = x0, x1
            yk = y.astype(jnp.float32).reshape(batch, 1)
            x_spec = pl.BlockSpec((tb, feat), lambda c, i: (c * spc + i, 0))
            y_spec = pl.BlockSpec((tb, 1), lambda c, i: (c * spc + i, 0))

        kernel = functools.partial(
            _contrastive_kernel,
            margin=float(margin), batch=batch, block_rows=tb,
            steps_per_split=spc, transposed=transposed, need_mask=need_mask)

        partials = pl.pallas_call(
            kernel,
            out_shape=jax.ShapeDtypeStruct((splits, 1), jnp.float32),
            grid_spec=pltpu.PrefetchScalarGridSpec(
                num_scalar_prefetch=0,
                grid=(splits, spc),
                in_specs=[x_spec, x_spec, y_spec],
                out_specs=pl.BlockSpec((1, 1), lambda c, i: (c, 0)),
            ),
            compiler_params=pltpu.CompilerParams(
                dimension_semantics=("parallel", "arbitrary"),
                vmem_limit_bytes=vmem_limit,
            ),
            cost_estimate=pl.CostEstimate(
                flops=3 * batch * feat + 8 * batch,
                transcendentals=batch,
                bytes_accessed=2 * batch * feat * itemsize + batch * 4
                               + splits * 4,
            ),
        )(x0k, x1k, yk)

        # Cross-split sum and the 0.5/B scale live in the wrapper: they would
        # be incorrect inside a pl.when on the parallel split axis.
        return jnp.sum(partials) * (0.5 / batch)

    return contrastive_loss


def reference_loss(x0, x1, y, margin):
    diff = x0 - x1
    dist_sq = jnp.sum(diff ** 2, axis=1)
    dist = jnp.sqrt(dist_sq)
    mdist = jnp.maximum(margin - dist, 0.0)
    loss = y * dist_sq + (1.0 - y) * mdist ** 2
    return jnp.sum(loss) / 2.0 / x0.shape[0]


if __name__ == "__main__":
    margin = 1.0

    # ---- 1) small shape consistent with the module (siamese embedding pairs);
    #         D < 128 -> lane-dense (D, B) path, single tile, no mask ----
    B, D = 8, 32
    k0, k1, k2 = jax.random.split(jax.random.PRNGKey(0), 3)
    x0 = jax.random.normal(k0, (B, D), dtype=jnp.float32)
    x1 = jax.random.normal(k1, (B, D), dtype=jnp.float32)
    y = jax.random.bernoulli(k2, p=0.5, shape=(B,)).astype(jnp.float32)

    loss_fn = make_contrastive_loss(margin)
    out = loss_fn(x0, x1, y)
    jax.block_until_ready(out)
    ref = reference_loss(x0, x1, y, margin)
    assert jnp.allclose(out, ref, rtol=1e-5, atol=1e-6), (out, ref)

    # ---- 2) (B, D) row layout path: D >= 128, bf16 inputs cast in-kernel,
    #         B not a tile multiple -> 2-way split + padded-row masking ----
    B2, D2 = 40, 160
    k3, k4, k5 = jax.random.split(jax.random.PRNGKey(1), 3)
    x0b = jax.random.normal(k3, (B2, D2), dtype=jnp.bfloat16)
    x1b = jax.random.normal(k4, (B2, D2), dtype=jnp.bfloat16)
    yb = jax.random.bernoulli(k5, p=0.5, shape=(B2,)).astype(jnp.float32)

    loss_fn_tiled = make_contrastive_loss(margin, max_block_rows=16)
    out2 = loss_fn_tiled(x0b, x1b, yb)
    jax.block_until_ready(out2)
    ref2 = reference_loss(x0b.astype(jnp.float32), x1b.astype(jnp.float32),
                          yb, margin)
    assert jnp.allclose(out2, ref2, rtol=2e-2, atol=1e-3), (out2, ref2)

    # ---- 3) lane-dense (D, B) path with tiling + masking + 2-way split ----
    B3, D3 = 300, 64
    k6, k7, k8 = jax.random.split(jax.random.PRNGKey(2), 3)
    x0c = jax.random.normal(k6, (B3, D3), dtype=jnp.float32)
    x1c = jax.random.normal(k7, (B3, D3), dtype=jnp.float32)
    yc = jax.random.bernoulli(k8, p=0.5, shape=(B3,)).astype(jnp.float32)

    loss_fn_lane = make_contrastive_loss(margin, max_block_rows=128)
    out3 = loss_fn_lane(x0c, x1c, yc)
    jax.block_until_ready(out3)
    ref3 = reference_loss(x0c, x1c, yc, margin)
    assert jnp.allclose(out3, ref3, rtol=1e-5, atol=1e-5), (out3, ref3)

    print("KERNEL_OK")
</pallas_src>

<mosaic_0001>
module attributes {stable_mosaic.version = 11 : i64} {
  func.func @_contrastive_kernel(%arg0: i32, %arg1: i32, %arg2: memref<32x8xf32, #tpu.memory_space<vmem>>, %arg3: memref<32x8xf32, #tpu.memory_space<vmem>>, %arg4: memref<1x8xf32, #tpu.memory_space<vmem>>, %arg5: memref<1x1xf32, #tpu.memory_space<vmem>>) attributes {dimension_semantics = [#tpu.dimension_semantics<parallel>, #tpu.dimension_semantics<arbitrary>], iteration_bounds = array<i64: 1, 1>, scalar_prefetch = 0 : i64, scratch_operands = 0 : i64, tpu.core_type = #tpu.core_type<tc>, window_params = [{transform_indices = @transform_0, window_bounds = array<i64: 32, 8>}, {transform_indices = @transform_1, window_bounds = array<i64: 32, 8>}, {transform_indices = @transform_2, window_bounds = array<i64: 1, 8>}, {transform_indices = @transform_3, window_bounds = array<i64: 1, 1>}]} {
    %c0_i32 = arith.constant 0 : i32
    %0 = arith.cmpi eq, %arg1, %c0_i32 : i32
    %1 = arith.extui %0 : i1 to i32
    %c0_i32_0 = arith.constant 0 : i32
    %2 = arith.cmpi ne, %1, %c0_i32_0 : i32
    scf.if %2 {
      %cst_14 = arith.constant 0.000000e+00 : f32
      %29 = vector.broadcast %cst_14 : f32 to vector<1x1xf32>
      %c0_15 = arith.constant 0 : index
      %c0_16 = arith.constant 0 : index
      %30 = vector.load %arg5[%c0_15, %c0_16] : memref<1x1xf32, #tpu.memory_space<vmem>>, vector<1x1xf32>
      tpu.vector_store %arg5[%c0_15, %c0_16], %29 {strides = array<i32>} : memref<1x1xf32, #tpu.memory_space<vmem>>, vector<1x1xf32>,
    } else {
    }
    %c0 = arith.constant 0 : index
    %c0_1 = arith.constant 0 : index
    %3 = vector.load %arg2[%c0, %c0_1] : memref<32x8xf32, #tpu.memory_space<vmem>>, vector<32x8xf32>
    %c0_2 = arith.constant 0 : index
    %c0_3 = arith.constant 0 : index
    %4 = vector.load %arg3[%c0_2, %c0_3] : memref<32x8xf32, #tpu.memory_space<vmem>>, vector<32x8xf32>
    %5 = arith.subf %3, %4 : vector<32x8xf32>
    %6 = arith.mulf %5, %5 : vector<32x8xf32>
    %cst = arith.constant dense<0.000000e+00> : vector<8xf32>
    %7 = vector.multi_reduction <add>, %6, %cst [0] : vector<32x8xf32> to vector<8xf32>
    %8 = vector.shape_cast %7 : vector<8xf32> to vector<1x8xf32>
    %9 = math.sqrt %8 : vector<1x8xf32>
    %cst_4 = arith.constant 1.000000e+00 : f32
    %10 = vector.broadcast %cst_4 : f32 to vector<1x8xf32>
    %11 = arith.subf %10, %9 : vector<1x8xf32>
    %cst_5 = arith.constant 0.000000e+00 : f32
    %12 = vector.broadcast %cst_5 : f32 to vector<1x8xf32>
    %13 = arith.maximumf %11, %12 : vector<1x8xf32>
    %c0_6 = arith.constant 0 : index
    %c0_7 = arith.constant 0 : index
    %14 = vector.load %arg4[%c0_6, %c0_7] : memref<1x8xf32, #tpu.memory_space<vmem>>, vector<1x8xf32>
    %15 = arith.mulf %14, %8 : vector<1x8xf32>
    %cst_8 = arith.constant 1.000000e+00 : f32
    %16 = vector.broadcast %cst_8 : f32 to vector<1x8xf32>
    %17 = arith.subf %16, %14 : vector<1x8xf32>
    %18 = arith.mulf %13, %13 : vector<1x8xf32>
    %19 = arith.mulf %17, %18 : vector<1x8xf32>
    %20 = arith.addf %15, %19 : vector<1x8xf32>
    %c0_9 = arith.constant 0 : index
    %c0_10 = arith.constant 0 : index
    %21 = vector.load %arg5[%c0_9, %c0_10] : memref<1x1xf32, #tpu.memory_space<vmem>>, vector<1x1xf32>
    %22 = vector.shape_cast %20 : vector<1x8xf32> to vector<1x1x8xf32>
    %cst_11 = arith.constant dense<0.000000e+00> : vector<1xf32>
    %23 = vector.multi_reduction <add>, %22, %cst_11 [1, 2] : vector<1x1x8xf32> to vector<1xf32>
    %24 = vector.shape_cast %23 : vector<1xf32> to vector<1x1x1xf32>
    %25 = vector.extract %24[0, 0, 0] : f32 from vector<1x1x1xf32>
    %26 = vector.broadcast %25 : f32 to vector<1x1xf32>
    %27 = arith.addf %21, %26 : vector<1x1xf32>
    %c0_12 = arith.constant 0 : index
    %c0_13 = arith.constant 0 : index
    %28 = vector.load %arg5[%c0_12, %c0_13] : memref<1x1xf32, #tpu.memory_space<vmem>>, vector<1x1xf32>
    tpu.vector_store %arg5[%c0_12, %c0_13], %27 {strides = array<i32>} : memref<1x1xf32, #tpu.memory_space<vmem>>, vector<1x1xf32>,
    return
  }
  func.func @transform_0(%arg0: i32, %arg1: i32) -> (i32, i32) {
    %c1_i32 = arith.constant 1 : i32
    %0 = arith.muli %arg0, %c1_i32 : i32
    %1 = arith.addi %0, %arg1 : i32
    %c0_i32 = arith.constant 0 : i32
    %c0_i32_0 = arith.constant 0 : i32
    return %c0_i32, %1 : i32, i32
  }
  func.func @transform_1(%arg0: i32, %arg1: i32) -> (i32, i32) {
    %c1_i32 = arith.constant 1 : i32
    %0 = arith.muli %arg0, %c1_i32 : i32
    %1 = arith.addi %0, %arg1 : i32
    %c0_i32 = arith.constant 0 : i32
    %c0_i32_0 = arith.constant 0 : i32
    return %c0_i32, %1 : i32, i32
  }
  func.func @transform_2(%arg0: i32, %arg1: i32) -> (i32, i32) {
    %c1_i32 = arith.constant 1 : i32
    %0 = arith.muli %arg0, %c1_i32 : i32
    %1 = arith.addi %0, %arg1 : i32
    %c0_i32 = arith.constant 0 : i32
    %c0_i32_0 = arith.constant 0 : i32
    return %c0_i32, %1 : i32, i32
  }
  func.func @transform_3(%arg0: i32, %arg1: i32) -> (i32, i32) {
    %c0_i32 = arith.constant 0 : i32
    %c0_i32_0 = arith.constant 0 : i32
    return %arg0, %c0_i32 : i32, i32
  }
}

</mosaic_0001>

<llo_original>
// kernel: contrastive_loss.1
$region0: #{contrastive_loss.1}
  #allocation0 [shape = 'u32[]', space=smem, size = 0x4, offset = 0x4, fixed_abs, tag = 'smem constant byte address 0x4 - core index']
  #allocation1 [shape = 'u32[72,128]{1,0:T(1,128)}', space=vmem, size = 0x9000, scoped, tag = 'internal scratch']
  %s0 = inlined_call_operand.vmem [shape: f32[32,8], index: 0, kind: input, shape index: {}]
  %s1 = inlined_call_operand.vmem [shape: f32[32,8], index: 1, kind: input, shape index: {}]
  %s2 = inlined_call_operand.vmem [shape: f32[1,8], index: 2, kind: input, shape index: {}]
  %s3 = inlined_call_operand.hbm [shape: f32[1,1], index: 3, kind: output, shape index: {}]
  %s4 = sld [smem:[#allocation0]]
  $region26: #{contrastive_loss.1} parent=0
    _
  %s6 = ssub.s32 1, %s4
  %s7 = scalar_select 0, %s6, %s4
  $region1: #{contrastive_loss.1} parent=0
    #allocation2 [shape = 'u8[512]{0}', space=vmem, size = 0x400, scoped, tag = 'output window, operand 0, single buffered']
    #allocation3 [shape = 's32[1]{0}', space=sflag, size = 0x4, scoped, tag = 'scoped memory for contrastive_loss.1']
    %8 = vsyncpa [#allocation3], 0
    // Predicated region
    $region2: #{contrastive_loss.1} parent=1 // pred_check
      _
    $region3: #{contrastive_loss.1} parent=1 // pred_check_branch
      %10 = sbr.rel (0) target = $region5
    $region4: #{contrastive_loss.1} parent=1 // pred_region
      %s11 = sadd.s32 0, 0
      %p12 = scmp.lt.s32.totalorder %s11, 0
      %s13 = scalar_select %p12, %s11, 0
      %s14 = smul.addr %s13, 8
      %s15 = scalar_lea.vmem %s0, %s14
      %s16 = sadd.s32 0, 0
    $region5: #{contrastive_loss.1} parent=1 // pred_fallthru
      _
    // Predicated region
    $region6: #{contrastive_loss.1} parent=1 // pred_check
      _
    $region7: #{contrastive_loss.1} parent=1 // pred_check_branch
      %18 = sbr.rel (0) target = $region9
    $region8: #{contrastive_loss.1} parent=1 // pred_region
      %s19 = sadd.s32 0, 0
      %p20 = scmp.lt.s32.totalorder %s19, 0
      %s21 = scalar_select %p20, %s19, 0
      %s22 = smul.addr %s21, 8
      %s23 = scalar_lea.vmem %s1, %s22
      %s24 = sadd.s32 0, 0
    $region9: #{contrastive_loss.1} parent=1 // pred_fallthru
      _
    // Predicated region
    $region10: #{contrastive_loss.1} parent=1 // pred_check
      _
    $region11: #{contrastive_loss.1} parent=1 // pred_check_branch
      %26 = sbr.rel (0) target = $region13
    $region12: #{contrastive_loss.1} parent=1 // pred_region
      %s27 = sadd.s32 0, 0
      %p28 = scmp.lt.s32.totalorder %s27, 0
      %s29 = scalar_select %p28, %s27, 0
      %s30 = scalar_lea.vmem %s2, %s29
      %s31 = sadd.s32 0, 0
    $region13: #{contrastive_loss.1} parent=1 // pred_fallthru
      _
    %s32 = sadd.s32 0, 0
    %p33 = scmp.lt.s32.totalorder %s32, 0
    %s34 = scalar_select %p33, %s32, 0
    %s35 = smul.addr %s34, 8
    %s36 = scalar_lea.vmem %s0, %s35
    %s37 = sadd.s32 0, 0
    %p38 = scmp.lt.s32.totalorder %s37, 0
    %s39 = scalar_select %p38, %s37, 0
    %s40 = smul.addr %s39, 8
    %s41 = scalar_lea.vmem %s1, %s40
    %s42 = sadd.s32 0, 0
    %p43 = scmp.lt.s32.totalorder %s42, 0
    %s44 = scalar_select %p43, %s42, 0
    %s45 = scalar_lea.vmem %s2, %s44
    %s46 = sadd.s32 0, 0
    %p47 = scmp.lt.s32.totalorder %s46, 0
    %s48 = scalar_select %p47, %s46, 0
    %s49 = smul.addr %s48, 8
    %s50 = scalar_lea.vmem %s0, %s49
    %s51 = sadd.s32 0, 0
    %s52 = sadd.s32 0, 0
    %p53 = scmp.lt.s32.totalorder %s52, 0
    %s54 = scalar_select %p53, %s52, 0
    %s55 = smul.addr %s54, 8
    %s56 = scalar_lea.vmem %s1, %s55
    %s57 = sadd.s32 0, 0
    %s58 = sadd.s32 0, 0
    %p59 = scmp.lt.s32.totalorder %s58, 0
    %s60 = scalar_select %p59, %s58, 0
    %s61 = scalar_lea.vmem %s2, %s60
    %s62 = sadd.s32 0, 0
    %p63 = scmp.eq.s32.totalorder 0, 0
    // Predicated region
    $region14: #{contrastive_loss.1} parent=1 // pred_check
      %p64 = pneg %p63
    $region15: #{contrastive_loss.1} parent=1 // pred_check_branch
      %66 = sbr.rel (%p64) target = $region17
    $region16: #{contrastive_loss.1} parent=1 // pred_region
      %vm67 = vcmask 0
      %68 = vst.msk [vmem:[#allocation2] sm:$0x1] %vm67, 0.0
    $region17: #{contrastive_loss.1} parent=1 // pred_fallthru
      _
    %v69 = vld [vmem:[%s50] sm:$0xff]
    %v70 = vld [vmem:[%s50 + $0x8] sm:$0xff]
    %v71 = vld [vmem:[%s50 + $0x10] sm:$0xff]
    %v72 = vld [vmem:[%s50 + $0x18] sm:$0xff]
    %v73 = vld [vmem:[%s56] sm:$0xff]
    %v74 = vld [vmem:[%s56 + $0x8] sm:$0xff]
    %v75 = vld [vmem:[%s56 + $0x10] sm:$0xff]
    %v76 = vld [vmem:[%s56 + $0x18] sm:$0xff]
    %v77 = vsub.f32 %v69, %v73
    %v78 = vsub.f32 %v70, %v74
    %v79 = vsub.f32 %v71, %v75
    %v80 = vsub.f32 %v72, %v76
    %v81 = vmul.f32 %v77, %v77
    %v82 = vmul.f32 %v78, %v78
    %v83 = vmul.f32 %v79, %v79
    %v84 = vmul.f32 %v80, %v80
    %vm85 = vcmask 64512
    %v86 = vsel %vm85, %v81, 0.0
    %v87 = vsel %vm85, %v82, 0.0
    %v88 = vadd.f32 %v86, %v87
    %v89 = vsel %vm85, %v83, 0.0
    %v90 = vadd.f32 %v88, %v89
    %v91 = vsel %vm85, %v84, 0.0
    %v92 = vadd.f32 %v90, %v91
    %v93 = vrot.slane %v92, 4
    %v94 = vadd.f32 %v92, %v93
    %v95 = vrot.slane %v94, 2
    %v96 = vadd.f32 %v94, %v95
    %v97 = vrot.slane %v96, 1
    %v98 = vadd.f32 %v96, %v97
    %v99 = vrsqrt.pop %v98
    %v100 = vmul.f32 %v99, %v98
    %v101 = vmul.f32 %v100, %v99
    %v102 = vmul.f32 0.5, %v101
    %v103 = vsub.f32 1.5, %v102
    %v104 = vmul.f32 %v99, %v103
    %v105 = vmul.f32 %v98, %v104
    %vm106 = vcmp.eq.f32.partialorder %v98, inf
    %v107 = vsel %vm106, %v98, %v105
    %vm108 = vcmp.eq.f32.partialorder %v98, 0.0
    %v109 = vand.u32 %v98, 2147483648
    %v110 = vsel %vm108, %v109, %v107
    %v111 = vsub.f32 1.0, %v110
    %v112 = vmax.f32 %v111, 0.0
    %v113 = vld [vmem:[%s61] sm:$0x1]
    %v114 = vmul.f32 %v113, %v98
    %v115 = vsub.f32 1.0, %v113
    %v116 = vmul.f32 %v112, %v112
    %v117 = vmul.f32 %v115, %v116
    %v118 = vadd.f32 %v114, %v117
    %v119 = vld [vmem:[#allocation2] sm:$0x1]
    %vm120 = vcmask 57344
    %v121 = vsel %vm120, %v118, 0.0
    %122 = vadd.xlane.f32.xlu0 %v121
    %v123 = vpop.xlane.xlu0 %122
    %v124 = vrot.slane %v123, 4
    %v125 = vadd.f32 %v123, %v124
    %v126 = vrot.slane %v125, 2
    %v127 = vadd.f32 %v125, %v126
    %v128 = vrot.slane %v127, 1
    %v129 = vadd.f32 %v127, %v128
    %s130 = vtos %v129
    %v131 = vstv %s130
    %v132 = vadd.f32 %v119, %v131
    %vm133 = vcmask 0
    %134 = vst.msk [vmem:[#allocation2] sm:$0x1] %vm133, %v132
    // Predicated region
    $region18: #{contrastive_loss.1} parent=1 // pred_check
      _
    $region19: #{contrastive_loss.1} parent=1 // pred_check_branch
      %136 = sbr.rel (0) target = $region21
    $region20: #{contrastive_loss.1} parent=1 // pred_region
      %138 = vsyncadd [#allocation3], 0
      %s140 = sshll.u32 [#allocation2], 4
      %s141 = int_to_ptr.vmem [resolvable:$true] %s140
      %s142 = sshll.u32 %s3, 4
      %s143 = int_to_ptr.hbm [resolvable:$true] %s142
      %145 = dma.vmem_to_hbm [thread:$0]  %s141, 16, %s143, [#allocation3]
    $region21: #{contrastive_loss.1} parent=1 // pred_fallthru
      _
    // Predicated region
    $region22: #{contrastive_loss.1} parent=1 // pred_check
      _
    $region23: #{contrastive_loss.1} parent=1 // pred_check_branch
      %147 = sbr.rel (0) target = $region25
    $region24: #{contrastive_loss.1} parent=1 // pred_region
      %149 = dma.done [#allocation3], 16
    $region25: #{contrastive_loss.1} parent=1 // pred_fallthru
      _
    %150 = vsyncpa [#allocation3], 1

</llo_original>
